<compile_context>
chip_gen: v5e
topology: v5e:2x2
jax: 0.10.0
libtpu: 0.0.40
codegen_flags: <defaults>
</compile_context>

<pallas_src>
import functools

import jax
import jax.numpy as jnp
from jax.experimental import pallas as pl
from jax.experimental.pallas import tpu as pltpu

C_IN = 3      # RGB; fixed by the 3-element mean/std Parameters of Inceptionv3Rank
KH = KW = 3   # stand-in backbone stem kernel
LANE = 128
SUBLANE = 16  # bf16 sublane packing


def _round_up(x, m):
    return (x + m - 1) // m * m


def _pad_to(x, shape):
    return jnp.pad(x, [(0, t - s) for s, t in zip(x.shape, shape)])


# ---------------------------------------------------------------------------
# Fused kernel: [patches @ W + b -> ReLU] -> global-average-pool -> fc -> sigmoid
# grid = (N, spatial_tiles); accumulator resident across the spatial axis.
# ---------------------------------------------------------------------------
def _fused_kernel(p_ref, cw_ref, cb_ref, fw_ref, fb_ref, o_ref, acc_ref,
                  *, tm, hw_valid):
    s = pl.program_id(1)

    @pl.when(s == 0)
    def _():
        acc_ref[...] = jnp.zeros_like(acc_ref)

    # Conv-as-matmul on this spatial tile (MXU), fused ReLU epilogue (VPU).
    h = jnp.dot(p_ref[0], cw_ref[...], preferred_element_type=jnp.float32)
    h = jnp.maximum(h + cb_ref[...], 0.0)                       # (tm, F_pad) f32

    # Masked sum-pool contribution as an MXU matmul; the mask zeroes the
    # zero-padded rows past the true Ho*Wo extent.
    row = s * tm + jax.lax.broadcasted_iota(jnp.int32, (1, tm), 1)
    ones = (row < hw_valid).astype(jnp.float32)                 # (1, tm)
    acc_ref[...] += jnp.dot(ones, h, preferred_element_type=jnp.float32)

    @pl.when(s == pl.num_programs(1) - 1)
    def _():
        pooled = acc_ref[...] * (1.0 / hw_valid)                # (1, F_pad)
        logits = jnp.dot(pooled, fw_ref[...],
                         preferred_element_type=jnp.float32) + fb_ref[...]
        o_ref[0] = jax.nn.sigmoid(logits).astype(o_ref.dtype)


# ---------------------------------------------------------------------------
# Host-side folding of the per-channel normalization into the conv.
# ---------------------------------------------------------------------------
def _fold_normalization(conv_w, conv_b, mean, std):
    # Recover, per im2col row, which input channel it reads (ordering-agnostic).
    probe = (jnp.arange(C_IN, dtype=jnp.float32).reshape(1, C_IN, 1, 1)
             * jnp.ones((1, C_IN, KH, KW), jnp.float32))
    rows = jax.lax.conv_general_dilated_patches(
        probe, (KH, KW), (1, 1), "VALID",
        dimension_numbers=("NCHW", "OIHW", "NCHW")).reshape(-1)
    chan = rows.astype(jnp.int32)                               # (K,)
    inv_std = 1.0 / std
    scale = inv_std[chan]                                       # (K,)
    shift = (mean * inv_std)[chan]                              # (K,)
    w_f = conv_w * scale[:, None]
    b_f = conv_b - shift[None, :] @ conv_w
    return w_f, b_f


# ---------------------------------------------------------------------------
# Full forward
# ---------------------------------------------------------------------------
def inceptionv3_rank_forward(x, params, *, tile_m=512):
    n, c, _, _ = x.shape
    assert c == C_IN

    conv_w, conv_b = _fold_normalization(
        params["conv_w"], params["conv_b"], params["mean"], params["std"])
    k, f = conv_w.shape
    nc = params["fc_w"].shape[1]

    k_pad = _round_up(k, 8)
    f_pad = _round_up(f, LANE)
    nc_pad = _round_up(nc, LANE)

    # im2col glue (XLA): 3x3 VALID patches -> (N, Ho*Wo, K)
    patches = jax.lax.conv_general_dilated_patches(
        x, (KH, KW), (1, 1), "VALID",
        dimension_numbers=("NCHW", "OIHW", "NCHW"))             # (N, K, Ho, Wo)
    _, _, ho, wo = patches.shape
    hw = ho * wo
    patches = patches.transpose(0, 2, 3, 1).reshape(n, hw, k)

    tm = min(tile_m, _round_up(hw, SUBLANE))
    hw_pad = _round_up(hw, tm)
    s_tiles = hw_pad // tm

    patches = _pad_to(patches, (n, hw_pad, k_pad)).astype(jnp.bfloat16)
    cw = _pad_to(conv_w, (k_pad, f_pad)).astype(jnp.bfloat16)
    cb = _pad_to(conv_b, (1, f_pad)).astype(jnp.float32)
    fw = _pad_to(params["fc_w"], (f_pad, nc_pad)).astype(jnp.float32)
    fb = _pad_to(params["fc_b"], (1, nc_pad)).astype(jnp.float32)

    kernel = functools.partial(_fused_kernel, tm=tm, hw_valid=hw)
    out = pl.pallas_call(
        kernel,
        out_shape=jax.ShapeDtypeStruct((n, 1, nc_pad), jnp.float32),
        grid_spec=pltpu.PrefetchScalarGridSpec(
            num_scalar_prefetch=0,
            grid=(n, s_tiles),
            in_specs=[
                pl.BlockSpec((1, tm, k_pad), lambda i, s: (i, s, 0)),   # patches
                pl.BlockSpec((k_pad, f_pad), lambda i, s: (0, 0)),      # conv_w'
                pl.BlockSpec((1, f_pad), lambda i, s: (0, 0)),          # conv_b'
                pl.BlockSpec((f_pad, nc_pad), lambda i, s: (0, 0)),     # fc_w
                pl.BlockSpec((1, nc_pad), lambda i, s: (0, 0)),         # fc_b
            ],
            out_specs=pl.BlockSpec((1, 1, nc_pad), lambda i, s: (i, 0, 0)),
            scratch_shapes=[pltpu.VMEM((1, f_pad), jnp.float32)],
        ),
        compiler_params=pltpu.CompilerParams(
            dimension_semantics=("parallel", "arbitrary"),
            vmem_limit_bytes=32 * 1024 * 1024,
        ),
    )(patches, cw, cb, fw, fb)
    return out[:, 0, :nc]


# ---------------------------------------------------------------------------
# Pure-JAX reference of the same (stand-in) forward, for a correctness check.
# ---------------------------------------------------------------------------
def _reference_forward(x, params):
    n = x.shape[0]
    mean = params["mean"].reshape(1, C_IN, 1, 1)
    std = params["std"].reshape(1, C_IN, 1, 1)
    xn = (x - mean) / std
    patches = jax.lax.conv_general_dilated_patches(
        xn, (KH, KW), (1, 1), "VALID",
        dimension_numbers=("NCHW", "OIHW", "NCHW"))
    _, k, ho, wo = patches.shape
    p = patches.transpose(0, 2, 3, 1).reshape(n, ho * wo, k)
    feat = jnp.maximum(
        jnp.einsum("nmk,kf->nmf", p, params["conv_w"]) + params["conv_b"], 0.0)
    pooled = feat.mean(axis=1)
    logits = pooled @ params["fc_w"] + params["fc_b"]
    return jax.nn.sigmoid(logits)


def init_params(key, in_features=32, num_classes=4):
    k1, k2, k3, k4 = jax.random.split(key, 4)
    return {
        # non-trainable Parameters of Inceptionv3Rank
        "mean": jnp.array([0.5, 0.5, 0.5], dtype=jnp.float32),
        "std": jnp.array([0.5, 0.5, 0.5], dtype=jnp.float32),
        # synthetic backbone stem (3x3 conv, C_IN -> in_features)
        "conv_w": 0.1 * jax.random.normal(k1, (C_IN * KH * KW, in_features), jnp.float32),
        "conv_b": 0.1 * jax.random.normal(k2, (1, in_features), jnp.float32),
        # replaced fc: Linear(in_features, num_classes, bias=True)
        "fc_w": 0.1 * jax.random.normal(k3, (in_features, num_classes), jnp.float32),
        "fc_b": 0.1 * jax.random.normal(k4, (1, num_classes), jnp.float32),
    }


if __name__ == "__main__":
    key = jax.random.PRNGKey(0)
    k_x, k_p = jax.random.split(key)

    # small NCHW input consistent with the module (RGB image batch)
    x = jax.random.uniform(k_x, (2, 3, 16, 16), dtype=jnp.float32)
    params = init_params(k_p, in_features=32, num_classes=4)

    out = jax.jit(inceptionv3_rank_forward)(x, params)
    out = jax.block_until_ready(out)
    ref = _reference_forward(x, params)

    assert out.shape == (2, 4)
    assert bool(jnp.all((out >= 0.0) & (out <= 1.0)))            # sigmoid range
    assert bool(jnp.max(jnp.abs(out - ref)) < 3e-2)              # matches pure-JAX ref (bf16 MXU tol)
    print("KERNEL_OK")
</pallas_src>

<mosaic_0001>
module attributes {stable_mosaic.version = 11 : i64} {
  func.func @_fused_kernel(%arg0: i32, %arg1: i32, %arg2: memref<1x208x32xbf16, #tpu.memory_space<vmem>>, %arg3: memref<32x128xbf16, #tpu.memory_space<vmem>>, %arg4: memref<1x128xf32, #tpu.memory_space<vmem>>, %arg5: memref<128x128xf32, #tpu.memory_space<vmem>>, %arg6: memref<1x128xf32, #tpu.memory_space<vmem>>, %arg7: memref<1x1x128xf32, #tpu.memory_space<vmem>>, %arg8: memref<1x128xf32, #tpu.memory_space<vmem>>) attributes {dimension_semantics = [#tpu.dimension_semantics<parallel>, #tpu.dimension_semantics<arbitrary>], iteration_bounds = array<i64: 2, 1>, scalar_prefetch = 0 : i64, scratch_operands = 1 : i64, tpu.core_type = #tpu.core_type<tc>, window_params = [{transform_indices = @transform_0, window_bounds = array<i64: 1, 208, 32>}, {pipeline_mode = #tpu.pipeline_mode<synchronous>, transform_indices = @transform_1, window_bounds = array<i64: 32, 128>}, {pipeline_mode = #tpu.pipeline_mode<synchronous>, transform_indices = @transform_2, window_bounds = array<i64: 1, 128>}, {pipeline_mode = #tpu.pipeline_mode<synchronous>, transform_indices = @transform_3, window_bounds = array<i64: 128, 128>}, {pipeline_mode = #tpu.pipeline_mode<synchronous>, transform_indices = @transform_4, window_bounds = array<i64: 1, 128>}, {transform_indices = @transform_5, window_bounds = array<i64: 1, 1, 128>}]} {
    %c0_i32 = arith.constant 0 : i32
    %0 = arith.cmpi eq, %arg1, %c0_i32 : i32
    %1 = arith.extui %0 : i1 to i32
    %c0_i32_0 = arith.constant 0 : i32
    %2 = arith.cmpi ne, %1, %c0_i32_0 : i32
    scf.if %2 {
      %cst_15 = arith.constant 0.000000e+00 : f32
      %27 = vector.broadcast %cst_15 : f32 to vector<1x128xf32>
      %c0_16 = arith.constant 0 : index
      %c0_17 = arith.constant 0 : index
      %28 = vector.load %arg8[%c0_16, %c0_17] : memref<1x128xf32, #tpu.memory_space<vmem>>, vector<1x128xf32>
      tpu.vector_store %arg8[%c0_16, %c0_17], %27 {strides = array<i32>} : memref<1x128xf32, #tpu.memory_space<vmem>>, vector<1x128xf32>,
    } else {
    }
    %c0 = arith.constant 0 : index
    %c0_1 = arith.constant 0 : index
    %c0_2 = arith.constant 0 : index
    %3 = vector.load %arg2[%c0, %c0_1, %c0_2] : memref<1x208x32xbf16, #tpu.memory_space<vmem>>, vector<1x208x32xbf16>
    %4 = vector.shape_cast %3 : vector<1x208x32xbf16> to vector<208x32xbf16>
    %c0_3 = arith.constant 0 : index
    %c0_4 = arith.constant 0 : index
    %5 = vector.load %arg3[%c0_3, %c0_4] : memref<32x128xbf16, #tpu.memory_space<vmem>>, vector<32x128xbf16>
    %cst = arith.constant dense<0.000000e+00> : vector<208x128xf32>
    %6 = tpu.matmul %4, %5, %cst {dimension_numbers = #tpu.dot_dimension_numbers<[1], [0], [0], [1], [0, 0, 1, 1], [], []>} : vector<208x32xbf16>, vector<32x128xbf16>, vector<208x128xf32> -> vector<208x128xf32>
    %c0_5 = arith.constant 0 : index
    %c0_6 = arith.constant 0 : index
    %7 = vector.load %arg4[%c0_5, %c0_6] : memref<1x128xf32, #tpu.memory_space<vmem>>, vector<1x128xf32>
    %8 = vector.broadcast %7 : vector<1x128xf32> to vector<208x128xf32>
    %9 = arith.addf %6, %8 : vector<208x128xf32>
    %cst_7 = arith.constant 0.000000e+00 : f32
    %10 = vector.broadcast %cst_7 : f32 to vector<208x128xf32>
    %11 = arith.maximumf %9, %10 : vector<208x128xf32>
    %c208_i32 = arith.constant 208 : i32
    %12 = arith.muli %arg1, %c208_i32 : i32
    %13 = tpu.iota {dimensions = array<i32: 1>} : vector<1x208xi32>
    %14 = vector.broadcast %12 : i32 to vector<1x208xi32>
    %15 = arith.addi %14, %13 : vector<1x208xi32>
    %c196_i32 = arith.constant 196 : i32
    %16 = vector.broadcast %c196_i32 : i32 to vector<1x208xi32>
    %17 = arith.cmpi slt, %15, %16 : vector<1x208xi32>
    %18 = arith.extui %17 : vector<1x208xi1> to vector<1x208xi32>
    %19 = arith.sitofp %18 : vector<1x208xi32> to vector<1x208xf32>
    %c0_8 = arith.constant 0 : index
    %c0_9 = arith.constant 0 : index
    %20 = vector.load %arg8[%c0_8, %c0_9] : memref<1x128xf32, #tpu.memory_space<vmem>>, vector<1x128xf32>
    %cst_10 = arith.constant dense<0.000000e+00> : vector<1x128xf32>
    %21 = tpu.matmul %19, %11, %cst_10 {dimension_numbers = #tpu.dot_dimension_numbers<[1], [0], [0], [1], [0, 0, 1, 1], [], []>} : vector<1x208xf32>, vector<208x128xf32>, vector<1x128xf32> -> vector<1x128xf32>
    %22 = arith.addf %20, %21 : vector<1x128xf32>
    %c0_11 = arith.constant 0 : index
    %c0_12 = arith.constant 0 : index
    %23 = vector.load %arg8[%c0_11, %c0_12] : memref<1x128xf32, #tpu.memory_space<vmem>>, vector<1x128xf32>
    tpu.vector_store %arg8[%c0_11, %c0_12], %22 {strides = array<i32>} : memref<1x128xf32, #tpu.memory_space<vmem>>, vector<1x128xf32>,
    %c0_i32_13 = arith.constant 0 : i32
    %24 = arith.cmpi eq, %arg1, %c0_i32_13 : i32
    %25 = arith.extui %24 : i1 to i32
    %c0_i32_14 = arith.constant 0 : i32
    %26 = arith.cmpi ne, %25, %c0_i32_14 : i32
    scf.if %26 {
      %c0_15 = arith.constant 0 : index
      %c0_16 = arith.constant 0 : index
      %27 = vector.load %arg8[%c0_15, %c0_16] : memref<1x128xf32, #tpu.memory_space<vmem>>, vector<1x128xf32>
      %cst_17 = arith.constant 0.00510204071 : f32
      %28 = vector.broadcast %cst_17 : f32 to vector<1x128xf32>
      %29 = arith.mulf %27, %28 : vector<1x128xf32>
      %c0_18 = arith.constant 0 : index
      %c0_19 = arith.constant 0 : index
      %30 = vector.load %arg5[%c0_18, %c0_19] : memref<128x128xf32, #tpu.memory_space<vmem>>, vector<128x128xf32>
      %cst_20 = arith.constant dense<0.000000e+00> : vector<1x128xf32>
      %31 = tpu.matmul %29, %30, %cst_20 {dimension_numbers = #tpu.dot_dimension_numbers<[1], [0], [0], [1], [0, 0, 1, 1], [], []>} : vector<1x128xf32>, vector<128x128xf32>, vector<1x128xf32> -> vector<1x128xf32>
      %c0_21 = arith.constant 0 : index
      %c0_22 = arith.constant 0 : index
      %32 = vector.load %arg6[%c0_21, %c0_22] : memref<1x128xf32, #tpu.memory_space<vmem>>, vector<1x128xf32>
      %33 = arith.addf %31, %32 : vector<1x128xf32>
      %34 = arith.negf %33 : vector<1x128xf32>
      %35 = math.exp %34 : vector<1x128xf32>
      %cst_23 = arith.constant 1.000000e+00 : f32
      %36 = vector.broadcast %cst_23 : f32 to vector<1x128xf32>
      %37 = arith.addf %36, %35 : vector<1x128xf32>
      %38 = arith.divf %36, %37 : vector<1x128xf32>
      %c0_24 = arith.constant 0 : index
      %c0_25 = arith.constant 0 : index
      %c0_26 = arith.constant 0 : index
      %39 = vector.load %arg7[%c0_24, %c0_25, %c0_26] : memref<1x1x128xf32, #tpu.memory_space<vmem>>, vector<1x1x128xf32>
      %40 = vector.shape_cast %39 : vector<1x1x128xf32> to vector<1x128xf32>
      %41 = vector.shape_cast %38 : vector<1x128xf32> to vector<1x1x128xf32>
      tpu.vector_store %arg7[%c0_24, %c0_25, %c0_26], %41 {strides = array<i32>} : memref<1x1x128xf32, #tpu.memory_space<vmem>>, vector<1x1x128xf32>,
    } else {
    }
    return
  }
  func.func @transform_0(%arg0: i32, %arg1: i32) -> (i32, i32, i32) {
    %c0_i32 = arith.constant 0 : i32
    %c0_i32_0 = arith.constant 0 : i32
    return %arg0, %arg1, %c0_i32 : i32, i32, i32
  }
  func.func @transform_1(%arg0: i32, %arg1: i32) -> (i32, i32) {
    %c0_i32 = arith.constant 0 : i32
    %c0_i32_0 = arith.constant 0 : i32
    %c0_i32_1 = arith.constant 0 : i32
    return %c0_i32, %c0_i32_0 : i32, i32
  }
  func.func @transform_2(%arg0: i32, %arg1: i32) -> (i32, i32) {
    %c0_i32 = arith.constant 0 : i32
    %c0_i32_0 = arith.constant 0 : i32
    %c0_i32_1 = arith.constant 0 : i32
    return %c0_i32, %c0_i32_0 : i32, i32
  }
  func.func @transform_3(%arg0: i32, %arg1: i32) -> (i32, i32) {
    %c0_i32 = arith.constant 0 : i32
    %c0_i32_0 = arith.constant 0 : i32
    %c0_i32_1 = arith.constant 0 : i32
    return %c0_i32, %c0_i32_0 : i32, i32
  }
  func.func @transform_4(%arg0: i32, %arg1: i32) -> (i32, i32) {
    %c0_i32 = arith.constant 0 : i32
    %c0_i32_0 = arith.constant 0 : i32
    %c0_i32_1 = arith.constant 0 : i32
    return %c0_i32, %c0_i32_0 : i32, i32
  }
  func.func @transform_5(%arg0: i32, %arg1: i32) -> (i32, i32, i32) {
    %c0_i32 = arith.constant 0 : i32
    %c0_i32_0 = arith.constant 0 : i32
    %c0_i32_1 = arith.constant 0 : i32
    return %arg0, %c0_i32, %c0_i32_0 : i32, i32, i32
  }
}

</mosaic_0001>

<llo_original>
// kernel: inceptionv3_rank_forward.1
$region0: #{inceptionv3_rank_forward.1}
  #allocation0 [shape = 'u32[]', space=smem, size = 0x4, offset = 0x4, fixed_abs, tag = 'smem constant byte address 0x4 - core index']
  #allocation1 [shape = 'u32[72,128]{1,0:T(1,128)}', space=vmem, size = 0x9000, scoped, tag = 'internal scratch']
  #allocation2 [shape = 'f32[1,128]{1,0:T(1,128)}', space=vmem, size = 0x200, scoped, tag = 'scratch operand']
  %s0 = inlined_call_operand.vmem [shape: bf16[2,208,32], index: 0, kind: input, shape index: {}]
  %s1 = inlined_call_operand.vmem [shape: bf16[32,128], index: 1, kind: input, shape index: {}]
  %s2 = inlined_call_operand.vmem [shape: f32[1,128], index: 2, kind: input, shape index: {}]
  %s3 = inlined_call_operand.vmem [shape: f32[128,128], index: 3, kind: input, shape index: {}]
  %s4 = inlined_call_operand.vmem [shape: f32[1,128], index: 4, kind: input, shape index: {}]
  %s5 = inlined_call_operand.hbm [shape: f32[2,1,128], index: 5, kind: output, shape index: {}]
  %s6 = sld [smem:[#allocation0]]
  $region61: #{inceptionv3_rank_forward.1} parent=0
    _
  %s8 = ssub.s32 1, %s6
  %s9 = scalar_select 0, %s8, %s6
  $region1: #{inceptionv3_rank_forward.1} parent=0
    #allocation3 [shape = 'u8[1024]{0}', space=vmem, size = 0x400, scoped, tag = 'output window, operand 0']
    #allocation4 [shape = 's32[2]{0}', space=sflag, size = 0x8, scoped, tag = 'scoped memory for inceptionv3_rank_forward.1']
    %10 = vsyncpa [#allocation4], 0
    %s11 = scalar_lea.sflag [#allocation4], 1
    %12 = vsyncpa %s11, 0
    loop: start=0, step=1, limit=4
    $region2: #{inceptionv3_rank_forward.1} parent=1 // loop_pre_header
      _
    $region3: #{inceptionv3_rank_forward.1} parent=1 // loop_header
      %s14 = sphi 0, %s18
      %p15 = scmp.ge.s32.totalorder %s14, 4
      %s21 = sphi 0, %s33
      %s22 = sphi 0, %s29
      %s23 = sphi 0, %s21
      %s24 = sphi 0, %s22
      %s25 = sphi 0, %s23
      %s26 = sphi 0, %s24
      %s38 = sphi 0, %s40
      %s41 = sphi 0, %s38
      %s42 = sphi 0, %s41
      %s58 = sphi 0, %s42
      %s62 = sphi 0, %s62
      %s64 = sphi 0, %s62
      %s65 = sphi 0, %s64
      %s79 = sphi 0, %s65
      %s83 = sphi 0, %s83
      %s85 = sphi 0, %s83
      %s86 = sphi 0, %s85
      %s100 = sphi 0, %s86
      %s104 = sphi 0, %s104
      %s106 = sphi 0, %s104
      %s107 = sphi 0, %s106
      %s121 = sphi 0, %s107
      %s125 = sphi 0, %s125
      %s127 = sphi 0, %s125
      %s128 = sphi 0, %s127
      %s142 = sphi 0, %s128
      %s148 = sphi 0, %s150
      %s151 = sphi 0, %s148
      %s152 = sphi 0, %s151
      %s168 = sphi 0, %s152
    $region4: #{inceptionv3_rank_forward.1} parent=1 // loop_header_branch
      %17 = sbr.rel (%p15) target = $region8
    $region5: #{inceptionv3_rank_forward.1} parent=1 // loop_body
      %s19 = ssub.s32 %s14, 1
      %s20 = ssub.s32 %s14, 2
      %s27 = sadd.s32 1, %s22
      %p28 = scmp.ge.s32.totalorder %s27, 1
      %s29 = scalar_select %p28, 0, %s27
      %s30 = sadd.s32 1, %s21
      %s31 = scalar_select %p28, %s30, %s21
      %p32 = scmp.ge.s32.totalorder %s31, 2
      %s33 = scalar_select %p32, 0, %s31
      %s34 = ssub.s32 %s21, %s33
      %s35 = ssub.s32 %s22, %s29
      %s36 = sor.u32 %s34, %s35
      %p37 = scmp.eq.s32.totalorder %s36, 0
      %s39 = sadd.s32 %s38, 1
      %s40 = scalar_select %p37, %s38, %s39
      %p43 = pneg %p37
      %p44 = scmp.eq.s32.totalorder %s14, 1
      %p45 = por %p43, %p44
      %p46 = scmp.ne.s32.totalorder %s38, %s41
      %p47 = scmp.eq.s32.totalorder %s14, 0
      %p48 = por %p46, %p47
      %p49 = scmp.ne.s32.totalorder %s38, %s41
      %p50 = scmp.eq.s32.totalorder %s19, 1
      %p51 = por %p49, %p50
      %p52 = scmp.ne.s32.totalorder %s41, %s42
      %p53 = scmp.eq.s32.totalorder %s19, 0
      %p54 = por %p52, %p53
      %p55 = scmp.ne.s32.totalorder %s41, %s42
      %p56 = scmp.eq.s32.totalorder %s20, 1
      %p57 = por %p55, %p56
      %p59 = scmp.ne.s32.totalorder %s42, %s58
      %p60 = scmp.eq.s32.totalorder %s20, 0
      %p61 = por %p59, %p60
      %s63 = sadd.s32 %s62, 1
      %p66 = scmp.eq.s32.totalorder %s14, 1
      %p67 = scmp.ne.s32.totalorder %s62, %s64
      %p68 = scmp.eq.s32.totalorder %s14, 0
      %p69 = por %p67, %p68
      %p70 = scmp.ne.s32.totalorder %s62, %s64
      %p71 = scmp.eq.s32.totalorder %s19, 1
      %p72 = por %p70, %p71
      %p73 = scmp.ne.s32.totalorder %s64, %s65
      %p74 = scmp.eq.s32.totalorder %s19, 0
      %p75 = por %p73, %p74
      %p76 = scmp.ne.s32.totalorder %s64, %s65
      %p77 = scmp.eq.s32.totalorder %s20, 1
      %p78 = por %p76, %p77
      %p80 = scmp.ne.s32.totalorder %s65, %s79
      %p81 = scmp.eq.s32.totalorder %s20, 0
      %p82 = por %p80, %p81
      %s84 = sadd.s32 %s83, 1
      %p87 = scmp.eq.s32.totalorder %s14, 1
      %p88 = scmp.ne.s32.totalorder %s83, %s85
      %p89 = scmp.eq.s32.totalorder %s14, 0
      %p90 = por %p88, %p89
      %p91 = scmp.ne.s32.totalorder %s83, %s85
      %p92 = scmp.eq.s32.totalorder %s19, 1
      %p93 = por %p91, %p92
      %p94 = scmp.ne.s32.totalorder %s85, %s86
      %p95 = scmp.eq.s32.totalorder %s19, 0
      %p96 = por %p94, %p95
      %p97 = scmp.ne.s32.totalorder %s85, %s86
      %p98 = scmp.eq.s32.totalorder %s20, 1
      %p99 = por %p97, %p98
      %p101 = scmp.ne.s32.totalorder %s86, %s100
      %p102 = scmp.eq.s32.totalorder %s20, 0
      %p103 = por %p101, %p102
      %s105 = sadd.s32 %s104, 1
      %p108 = scmp.eq.s32.totalorder %s14, 1
      %p109 = scmp.ne.s32.totalorder %s104, %s106
      %p110 = scmp.eq.s32.totalorder %s14, 0
      %p111 = por %p109, %p110
      %p112 = scmp.ne.s32.totalorder %s104, %s106
      %p113 = scmp.eq.s32.totalorder %s19, 1
      %p114 = por %p112, %p113
      %p115 = scmp.ne.s32.totalorder %s106, %s107
      %p116 = scmp.eq.s32.totalorder %s19, 0
      %p117 = por %p115, %p116
      %p118 = scmp.ne.s32.totalorder %s106, %s107
      %p119 = scmp.eq.s32.totalorder %s20, 1
      %p120 = por %p118, %p119
      %p122 = scmp.ne.s32.totalorder %s107, %s121
      %p123 = scmp.eq.s32.totalorder %s20, 0
      %p124 = por %p122, %p123
      %s126 = sadd.s32 %s125, 1
      %p129 = scmp.eq.s32.totalorder %s14, 1
      %p130 = scmp.ne.s32.totalorder %s125, %s127
      %p131 = scmp.eq.s32.totalorder %s14, 0
      %p132 = por %p130, %p131
      %p133 = scmp.ne.s32.totalorder %s125, %s127
      %p134 = scmp.eq.s32.totalorder %s19, 1
      %p135 = por %p133, %p134
      %p136 = scmp.ne.s32.totalorder %s127, %s128
      %p137 = scmp.eq.s32.totalorder %s19, 0
      %p138 = por %p136, %p137
      %p139 = scmp.ne.s32.totalorder %s127, %s128
      %p140 = scmp.eq.s32.totalorder %s20, 1
      %p141 = por %p139, %p140
      %p143 = scmp.ne.s32.totalorder %s128, %s142
      %p144 = scmp.eq.s32.totalorder %s20, 0
      %p145 = por %p143, %p144
      %s146 = ssub.s32 %s21, %s33
      %p147 = scmp.eq.s32.totalorder %s146, 0
      %s149 = sadd.s32 %s148, 1
      %s150 = scalar_select %p147, %s148, %s149
      %p153 = pneg %p147
      %p154 = scmp.eq.s32.totalorder %s14, 1
      %p155 = por %p153, %p154
      %p156 = scmp.ne.s32.totalorder %s148, %s151
      %p157 = scmp.eq.s32.totalorder %s14, 0
      %p158 = por %p156, %p157
      %p159 = scmp.ne.s32.totalorder %s148, %s151
      %p160 = scmp.eq.s32.totalorder %s19, 1
      %p161 = por %p159, %p160
      %p162 = scmp.ne.s32.totalorder %s151, %s152
      %p163 = scmp.eq.s32.totalorder %s19, 0
      %p164 = por %p162, %p163
      %p165 = scmp.ne.s32.totalorder %s151, %s152
      %p166 = scmp.eq.s32.totalorder %s20, 1
      %p167 = por %p165, %p166
      %p169 = scmp.ne.s32.totalorder %s152, %s168
      %p170 = scmp.eq.s32.totalorder %s20, 0
      %p171 = por %p169, %p170
      %p172 = scmp.le.s32.totalorder 1, %s14
      %p173 = scmp.lt.s32.totalorder %s14, 3
      %p174 = pnand %p172, %p173
      %p175 = pneg %p174
      // Predicated region
      $region9: #{inceptionv3_rank_forward.1} parent=5 // pred_check
        _
      $region10: #{inceptionv3_rank_forward.1} parent=5 // pred_check_branch
        %177 = sbr.rel (%p174) target = $region12
      $region11: #{inceptionv3_rank_forward.1} parent=5 // pred_region
        %s178 = ssub.s32 %s14, 1
        // Predicated region
        $region13: #{inceptionv3_rank_forward.1} parent=11 // pred_check
          %p179 = pneg %p75
        $region14: #{inceptionv3_rank_forward.1} parent=11 // pred_check_branch
          %181 = sbr.rel (%p179) target = $region16
        $region15: #{inceptionv3_rank_forward.1} parent=11 // pred_region
          _
        $region16: #{inceptionv3_rank_forward.1} parent=11 // pred_fallthru
          _
        // Predicated region
        $region17: #{inceptionv3_rank_forward.1} parent=11 // pred_check
          %p182 = pneg %p96
        $region18: #{inceptionv3_rank_forward.1} parent=11 // pred_check_branch
          %184 = sbr.rel (%p182) target = $region20
        $region19: #{inceptionv3_rank_forward.1} parent=11 // pred_region
          _
        $region20: #{inceptionv3_rank_forward.1} parent=11 // pred_fallthru
          _
        // Predicated region
        $region21: #{inceptionv3_rank_forward.1} parent=11 // pred_check
          %p185 = pneg %p117
        $region22: #{inceptionv3_rank_forward.1} parent=11 // pred_check_branch
          %187 = sbr.rel (%p185) target = $region24
        $region23: #{inceptionv3_rank_forward.1} parent=11 // pred_region
          _
        $region24: #{inceptionv3_rank_forward.1} parent=11 // pred_fallthru
          _
        // Predicated region
        $region25: #{inceptionv3_rank_forward.1} parent=11 // pred_check
          %p188 = pneg %p138
        $region26: #{inceptionv3_rank_forward.1} parent=11 // pred_check_branch
          %190 = sbr.rel (%p188) target = $region28
        $region27: #{inceptionv3_rank_forward.1} parent=11 // pred_region
          _
        $region28: #{inceptionv3_rank_forward.1} parent=11 // pred_fallthru
          _
      $region12: #{inceptionv3_rank_forward.1} parent=5 // pred_fallthru
        _
      %p191 = scmp.lt.s32.totalorder %s14, 2
      // Predicated region
      $region29: #{inceptionv3_rank_forward.1} parent=5 // pred_check
        %p192 = pneg %p191
      $region30: #{inceptionv3_rank_forward.1} parent=5 // pred_check_branch
        %194 = sbr.rel (%p192) target = $region32
      $region31: #{inceptionv3_rank_forward.1} parent=5 // pred_region
        // Predicated region
        $region33: #{inceptionv3_rank_forward.1} parent=31 // pred_check
          %p195 = pneg %p48
        $region34: #{inceptionv3_rank_forward.1} parent=31 // pred_check_branch
          %197 = sbr.rel (%p195) target = $region36
        $region35: #{inceptionv3_rank_forward.1} parent=31 // pred_region
          %s198 = smul.u32 26, %s22
          %p199 = scmp.lt.s32.totalorder %s21, 1
          %s200 = scalar_select %p199, %s21, 1
          %p201 = scmp.lt.s32.totalorder %s198, 25
          %s202 = scalar_select %p201, %s198, 25
          %s203 = smul.addr %s200, 26
          %s204 = sadd.s32 %s202, %s203
          %s205 = smul.addr %s204, 4
          %s206 = scalar_lea.vmem %s0, %s205
          %s207 = smul.u32 26, %s22
        $region36: #{inceptionv3_rank_forward.1} parent=31 // pred_fallthru
          _
      $region32: #{inceptionv3_rank_forward.1} parent=5 // pred_fallthru
        _
      %p208 = scmp.le.s32.totalorder 1, %s14
      %p209 = scmp.lt.s32.totalorder %s14, 3
      %p210 = pnand %p208, %p209
      %p211 = pneg %p210
      // Predicated region
      $region37: #{inceptionv3_rank_forward.1} parent=5 // pred_check
        _
      $region38: #{inceptionv3_rank_forward.1} parent=5 // pred_check_branch
        %213 = sbr.rel (%p210) target = $region40
      $region39: #{inceptionv3_rank_forward.1} parent=5 // pred_region
        %s214 = ssub.s32 %s14, 1
        %s215 = smul.u32 26, %s24
        %p216 = scmp.lt.s32.totalorder %s23, 1
        %s217 = scalar_select %p216, %s23, 1
        %p218 = scmp.lt.s32.totalorder %s215, 25
        %s219 = scalar_select %p218, %s215, 25
        %s220 = smul.addr %s217, 26
        %s221 = sadd.s32 %s219, %s220
        %s222 = smul.addr %s221, 4
        %s223 = scalar_lea.vmem %s0, %s222
        %p224 = pneg %p54
        %p225 = pneg %p51
        %p226 = pneg %p75
        %p227 = pneg %p72
        %p228 = pneg %p96
        %p229 = pneg %p93
        %p230 = pneg %p117
        %p231 = pneg %p114
        %p232 = pneg %p138
        %p233 = pneg %p135
        %p234 = pneg %p164
        %p235 = pneg %p161
        %s236 = sand.u32 %s151, 1
        %s237 = scalar_lea.sflag [#allocation4], %s236
        %s238 = sand.u32 %s151, 1
        %s239 = scalar_lea.vmem [#allocation3], %s238
        %s240 = smul.u32 26, %s24
        %p241 = scmp.lt.s32.totalorder %s23, 1
        %s242 = scalar_select %p241, %s23, 1
        %p243 = scmp.lt.s32.totalorder %s240, 25
        %s244 = scalar_select %p243, %s240, 25
        %s245 = smul.addr %s242, 26
        %s246 = sadd.s32 %s244, %s245
        %s247 = smul.addr %s246, 4
        %s248 = scalar_lea.vmem %s0, %s247
        %s249 = smul.u32 26, %s24
        %p251 = scmp.eq.s32.totalorder %s24, 0
        // Predicated region
        $region41: #{inceptionv3_rank_forward.1} parent=39 // pred_check
          %p252 = pneg %p251
        $region42: #{inceptionv3_rank_forward.1} parent=39 // pred_check_branch
          %254 = sbr.rel (%p252) target = $region44
        $region43: #{inceptionv3_rank_forward.1} parent=39 // pred_region
          %255 = vst [vmem:[#allocation2] sm:$0x1] 0.0
        $region44: #{inceptionv3_rank_forward.1} parent=39 // pred_fallthru
          _
        %v256 = vld [vmem:[%s248] sm:$0xf]
        %v257 = vld [vmem:[%s248 + $0x4] sm:$0xf]
        %v258 = vld [vmem:[%s248 + $0x8] sm:$0xf]
        %v259 = vld [vmem:[%s248 + $0xc] sm:$0xf]
        %v260 = vld [vmem:[%s248 + $0x10] sm:$0xf]
        %v261 = vld [vmem:[%s248 + $0x14] sm:$0xf]
        %v262 = vld [vmem:[%s248 + $0x18] sm:$0xf]
        %v263 = vld [vmem:[%s248 + $0x1c] sm:$0xf]
        %v264 = vld [vmem:[%s248 + $0x20] sm:$0xf]
        %v265 = vld [vmem:[%s248 + $0x24] sm:$0xf]
        %v266 = vld [vmem:[%s248 + $0x28] sm:$0xf]
        %v267 = vld [vmem:[%s248 + $0x2c] sm:$0xf]
        %v268 = vld [vmem:[%s248 + $0x30] sm:$0xf]
        %v269 = vld [vmem:[%s248 + $0x34] sm:$0xf]
        %v270 = vld [vmem:[%s248 + $0x38] sm:$0xf]
        %v271 = vld [vmem:[%s248 + $0x3c] sm:$0xf]
        %v272 = vld [vmem:[%s248 + $0x40] sm:$0xf]
        %v273 = vld [vmem:[%s248 + $0x44] sm:$0xf]
        %v274 = vld [vmem:[%s248 + $0x48] sm:$0xf]
        %v275 = vld [vmem:[%s248 + $0x4c] sm:$0xf]
        %v276 = vld [vmem:[%s248 + $0x50] sm:$0xf]
        %v277 = vld [vmem:[%s248 + $0x54] sm:$0xf]
        %v278 = vld [vmem:[%s248 + $0x58] sm:$0xf]
        %v279 = vld [vmem:[%s248 + $0x5c] sm:$0xf]
        %v280 = vld [vmem:[%s248 + $0x60] sm:$0xf]
        %v281 = vld [vmem:[%s248 + $0x64] sm:$0xf]
        %v282 = vld [vmem:[%s1] sm:$0xf]
        %v283 = vld [vmem:[%s1 + $0x4] sm:$0xf]
        %v284 = vld [vmem:[%s1 + $0x8] sm:$0xf]
        %v285 = vld [vmem:[%s1 + $0xc] sm:$0xf]
        %v286 = vld [vmem:[%s2] sm:$0x1]
        %v288 = vperm.slane %v286, 0
        %v316 = vunpack.c.l.b16 %v256
        %v317 = vunpack.c.l.b16 %v257
        %v318 = vunpack.c.l.b16 %v258
        %v319 = vunpack.c.l.b16 %v259
        %v320 = vunpack.c.l.b16 %v260
        %v321 = vunpack.c.l.b16 %v261
        %v322 = vunpack.c.l.b16 %v262
        %v323 = vunpack.c.l.b16 %v263
        %v324 = vunpack.c.l.b16 %v264
        %v325 = vunpack.c.l.b16 %v265
        %v326 = vunpack.c.l.b16 %v266
        %v327 = vunpack.c.l.b16 %v267
        %v328 = vunpack.c.l.b16 %v268
        %v329 = vunpack.c.l.b16 %v269
        %v330 = vunpack.c.l.b16 %v270
        %v331 = vunpack.c.l.b16 %v271
        %v332 = vunpack.c.l.b16 %v272
        %v333 = vunpack.c.l.b16 %v273
        %v334 = vunpack.c.l.b16 %v274
        %v335 = vunpack.c.l.b16 %v275
        %v336 = vunpack.c.l.b16 %v276
        %v337 = vunpack.c.l.b16 %v277
        %v338 = vunpack.c.l.b16 %v278
        %v339 = vunpack.c.l.b16 %v279
        %v340 = vunpack.c.l.b16 %v280
        %v341 = vunpack.c.l.b16 %v281
        %v342 = vpack.c.b16 %v317, %v316
        %v343 = vpack.c.b16 %v319, %v318
        %v344 = vpack.c.b16 %v321, %v320
        %v345 = vpack.c.b16 %v323, %v322
        %v346 = vpack.c.b16 %v325, %v324
        %v347 = vpack.c.b16 %v327, %v326
        %v348 = vpack.c.b16 %v329, %v328
        %v349 = vpack.c.b16 %v331, %v330
        %v350 = vpack.c.b16 %v333, %v332
        %v351 = vpack.c.b16 %v335, %v334
        %v352 = vpack.c.b16 %v337, %v336
        %v353 = vpack.c.b16 %v339, %v338
        %v354 = vpack.c.b16 %v341, %v340
        %v359 = vunpack.c.l.b16 %v282
        %v360 = vunpack.c.l.b16 %v283
        %v361 = vunpack.c.l.b16 %v284
        %v362 = vunpack.c.l.b16 %v285
        %v363 = vpack.c.b16 %v360, %v359
        %v364 = vpack.c.b16 %v362, %v361
        %vm367 = vcmask 261120
        %v369 = vsel %vm367, %v342, 0
        %v372 = vsel %vm367, %v343, 0
        %v375 = vsel %vm367, %v344, 0
        %v378 = vsel %vm367, %v345, 0
        %v381 = vsel %vm367, %v346, 0
        %v384 = vsel %vm367, %v347, 0
        %v387 = vsel %vm367, %v348, 0
        %v390 = vsel %vm367, %v349, 0
        %v393 = vsel %vm367, %v350, 0
        %v396 = vsel %vm367, %v351, 0
        %v399 = vsel %vm367, %v352, 0
        %v402 = vsel %vm367, %v353, 0
        %v405 = vsel %vm367, %v354, 0
        %407 = vmatpush.bf16.msra.mxu0 0
        %408 = vmatpush.bf16.msra.mxu0 0
        %409 = vmatpush.bf16.msra.mxu0 0
        %410 = vmatpush.bf16.msra.mxu0 0
        %411 = vmatpush.bf16.msra.mxu0 0
        %412 = vmatpush.bf16.msra.mxu0 0
        %413 = vmatpush.bf16.msra.mxu0 %v364
        %414 = vmatpush.bf16.msra.mxu0 %v363
        %415 = vmatmul.bf16.gmra.mxu0 %v369
        %v416 = vpop.f32.mrf.mxu0
        %v417 = vadd.f32 %v288, %v416
        %v418 = vpop.f32.mrf.mxu0
        %v419 = vadd.f32 %v288, %v418
        %420 = vmatmul.bf16.gmra.mxu0 %v372
        %v421 = vpop.f32.mrf.mxu0
        %v422 = vadd.f32 %v288, %v421
        %v423 = vpop.f32.mrf.mxu0
        %v424 = vadd.f32 %v288, %v423
        %425 = vmatmul.bf16.gmra.mxu0 %v375
        %v426 = vpop.f32.mrf.mxu0
        %v427 = vadd.f32 %v288, %v426
        %v428 = vpop.f32.mrf.mxu0
        %v429 = vadd.f32 %v288, %v428
        %430 = vmatmul.bf16.gmra.mxu0 %v378
        %v431 = vpop.f32.mrf.mxu0
        %v432 = vadd.f32 %v288, %v431
        %v433 = vpop.f32.mrf.mxu0
        %v434 = vadd.f32 %v288, %v433
        %435 = vmatmul.bf16.gmra.mxu0 %v381
        %v436 = vpop.f32.mrf.mxu0
        %v437 = vadd.f32 %v288, %v436
        %v438 = vpop.f32.mrf.mxu0
        %v439 = vadd.f32 %v288, %v438
        %440 = vmatmul.bf16.gmra.mxu0 %v384
        %v441 = vpop.f32.mrf.mxu0
        %v442 = vadd.f32 %v288, %v441
        %v443 = vpop.f32.mrf.mxu0
        %v444 = vadd.f32 %v288, %v443
        %445 = vmatmul.bf16.gmra.mxu0 %v387
        %v446 = vpop.f32.mrf.mxu0
        %v447 = vadd.f32 %v288, %v446
        %v448 = vpop.f32.mrf.mxu0
        %v449 = vadd.f32 %v288, %v448
        %450 = vmatmul.bf16.gmra.mxu0 %v390
        %v451 = vpop.f32.mrf.mxu0
        %v452 = vadd.f32 %v288, %v451
        %v453 = vpop.f32.mrf.mxu0
        %v454 = vadd.f32 %v288, %v453
        %455 = vmatmul.bf16.gmra.mxu0 %v393
        %v456 = vpop.f32.mrf.mxu0
        %v457 = vadd.f32 %v288, %v456
        %v458 = vpop.f32.mrf.mxu0
        %v459 = vadd.f32 %v288, %v458
        %460 = vmatmul.bf16.gmra.mxu0 %v396
        %v461 = vpop.f32.mrf.mxu0
        %v462 = vadd.f32 %v288, %v461
        %v463 = vpop.f32.mrf.mxu0
        %v464 = vadd.f32 %v288, %v463
        %465 = vmatmul.bf16.gmra.mxu0 %v399
        %v466 = vpop.f32.mrf.mxu0
        %v467 = vadd.f32 %v288, %v466
        %v468 = vpop.f32.mrf.mxu0
        %v469 = vadd.f32 %v288, %v468
        %470 = vmatmul.bf16.gmra.mxu0 %v402
        %v471 = vpop.f32.mrf.mxu0
        %v472 = vadd.f32 %v288, %v471
        %v473 = vpop.f32.mrf.mxu0
        %v474 = vadd.f32 %v288, %v473
        %475 = vmatmul.bf16.gmra.mxu0 %v405
        %v476 = vpop.f32.mrf.mxu0
        %v477 = vadd.f32 %v288, %v476
        %v478 = vpop.f32.mrf.mxu0
        %v479 = vadd.f32 %v288, %v478
        %480 = vdwg.mxu0
        %v481 = vmax.f32 %v417, 0.0
        %v482 = vmax.f32 %v419, 0.0
        %v483 = vmax.f32 %v422, 0.0
        %v484 = vmax.f32 %v424, 0.0
        %v485 = vmax.f32 %v427, 0.0
        %v486 = vmax.f32 %v429, 0.0
        %v487 = vmax.f32 %v432, 0.0
        %v488 = vmax.f32 %v434, 0.0
        %v489 = vmax.f32 %v437, 0.0
        %v490 = vmax.f32 %v439, 0.0
        %v491 = vmax.f32 %v442, 0.0
        %v492 = vmax.f32 %v444, 0.0
        %v493 = vmax.f32 %v447, 0.0
        %v494 = vmax.f32 %v449, 0.0
        %v495 = vmax.f32 %v452, 0.0
        %v496 = vmax.f32 %v454, 0.0
        %v497 = vmax.f32 %v457, 0.0
        %v498 = vmax.f32 %v459, 0.0
        %v499 = vmax.f32 %v462, 0.0
        %v500 = vmax.f32 %v464, 0.0
        %v501 = vmax.f32 %v467, 0.0
        %v502 = vmax.f32 %v469, 0.0
        %v503 = vmax.f32 %v472, 0.0
        %v504 = vmax.f32 %v474, 0.0
        %v505 = vmax.f32 %v477, 0.0
        %v506 = vmax.f32 %v479, 0.0
        %s507 = smul.u32 %s24, 208
        %v508 = vlaneseq
        %v509 = vand.u32 %v508, 127
        %v510 = vadd.s32 %v509, 128
        %v511 = vstv %s507
        %v512 = vadd.s32 %v511, %v509
        %v513 = vadd.s32 %v511, %v510
        %vm514 = vcmp.lt.s32.totalorder %v512, 196
        %vm515 = vcmp.lt.s32.totalorder %v513, 196
        %v516 = vsel %vm514, 1, 0
        %v517 = vsel %vm515, 1, 0
        %v518 = vcvt.s32.f32 %v516
        %v519 = vcvt.s32.f32 %v517
        %v520 = vld [vmem:[#allocation2] sm:$0x1]
        %vm521 = vcmask 654336
        %v523 = vsel %vm521, %v519, 0
        %525 = vmatpush.msra.mxu0 %v496
        %526 = vmatpush.msra.mxu0 %v495
        %527 = vmatpush.msra.mxu0 %v494
        %528 = vmatpush.msra.mxu0 %v493
        %529 = vmatpush.msra.mxu0 %v492
        %530 = vmatpush.msra.mxu0 %v491
        %531 = vmatpush.msra.mxu0 %v490
        %532 = vmatpush.msra.mxu0 %v489
        %533 = vmatpush.msra.mxu0 %v488
        %534 = vmatpush.msra.mxu0 %v487
        %535 = vmatpush.msra.mxu0 %v486
        %536 = vmatpush.msra.mxu0 %v485
        %537 = vmatpush.msra.mxu0 %v484
        %538 = vmatpush.msra.mxu0 %v483
        %539 = vmatpush.msra.mxu0 %v482
        %540 = vmatpush.msra.mxu0 %v481
        %541 = vmatmul.f32.gmra.mxu0 %v518
        %v542 = vpop.f32.mrf.mxu0
        %v543 = vadd.f32 0.0, %v542
        %544 = vdwg.mxu0
        %545 = vmatpush.msra.mxu0 0.0
        %546 = vmatpush.msra.mxu0 0.0
        %547 = vmatpush.msra.mxu0 0.0
        %548 = vmatpush.msra.mxu0 0.0
        %549 = vmatpush.msra.mxu0 0.0
        %550 = vmatpush.msra.mxu0 0.0
        %551 = vmatpush.msra.mxu0 %v506
        %552 = vmatpush.msra.mxu0 %v505
        %553 = vmatpush.msra.mxu0 %v504
        %554 = vmatpush.msra.mxu0 %v503
        %555 = vmatpush.msra.mxu0 %v502
        %556 = vmatpush.msra.mxu0 %v501
        %557 = vmatpush.msra.mxu0 %v500
        %558 = vmatpush.msra.mxu0 %v499
        %559 = vmatpush.msra.mxu0 %v498
        %560 = vmatpush.msra.mxu0 %v497
        %561 = vmatmul.f32.gmra.mxu0 %v523
        %v562 = vpop.f32.mrf.mxu0
        %v563 = vadd.f32 %v543, %v562
        %564 = vdwg.mxu0
        %v565 = vadd.f32 %v520, %v563
        %566 = vst [vmem:[#allocation2] sm:$0x1] %v565
        // Predicated region
        $region45: #{inceptionv3_rank_forward.1} parent=39 // pred_check
          %p567 = pneg %p251
        $region46: #{inceptionv3_rank_forward.1} parent=39 // pred_check_branch
          %569 = sbr.rel (%p567) target = $region48
        $region47: #{inceptionv3_rank_forward.1} parent=39 // pred_region
          %v570 = vld [vmem:[#allocation2] sm:$0x1]
          %v571 = vmul.f32 %v570, 0.0051020407
          %v572 = vld [vmem:[%s3] sm:$0xff]
          %v573 = vld [vmem:[%s3 + $0x8] sm:$0xff]
          %v574 = vld [vmem:[%s3 + $0x10] sm:$0xff]
          %v575 = vld [vmem:[%s3 + $0x18] sm:$0xff]
          %v576 = vld [vmem:[%s3 + $0x20] sm:$0xff]
          %v577 = vld [vmem:[%s3 + $0x28] sm:$0xff]
          %v578 = vld [vmem:[%s3 + $0x30] sm:$0xff]
          %v579 = vld [vmem:[%s3 + $0x38] sm:$0xff]
          %v580 = vld [vmem:[%s3 + $0x40] sm:$0xff]
          %v581 = vld [vmem:[%s3 + $0x48] sm:$0xff]
          %v582 = vld [vmem:[%s3 + $0x50] sm:$0xff]
          %v583 = vld [vmem:[%s3 + $0x58] sm:$0xff]
          %v584 = vld [vmem:[%s3 + $0x60] sm:$0xff]
          %v585 = vld [vmem:[%s3 + $0x68] sm:$0xff]
          %v586 = vld [vmem:[%s3 + $0x70] sm:$0xff]
          %v587 = vld [vmem:[%s3 + $0x78] sm:$0xff]
          %v588 = vld [vmem:[%s4] sm:$0x1]
          %589 = vmatpush.msra.mxu0 %v587
          %590 = vmatpush.msra.mxu0 %v586
          %591 = vmatpush.msra.mxu0 %v585
          %592 = vmatpush.msra.mxu0 %v584
          %593 = vmatpush.msra.mxu0 %v583
          %594 = vmatpush.msra.mxu0 %v582
          %595 = vmatpush.msra.mxu0 %v581
          %596 = vmatpush.msra.mxu0 %v580
          %597 = vmatpush.msra.mxu0 %v579
          %598 = vmatpush.msra.mxu0 %v578
          %599 = vmatpush.msra.mxu0 %v577
          %600 = vmatpush.msra.mxu0 %v576
          %601 = vmatpush.msra.mxu0 %v575
          %602 = vmatpush.msra.mxu0 %v574
          %603 = vmatpush.msra.mxu0 %v573
          %604 = vmatpush.msra.mxu0 %v572
          %605 = vmatmul.f32.gmra.mxu0 %v571
          %v606 = vpop.f32.mrf.mxu0
          %v607 = vadd.f32 %v588, %v606
          %608 = vdwg.mxu0
          %v609 = vxor.u32 %v607, 2147483648
          %v610 = vmul.f32 %v609, 1.442695
          %v611 = vpow.pop %v610
          %v612 = vadd.f32 %v611, 1.0
          %v613 = vrcp.pop %v612
          %v614 = vmul.f32 %v612, %v613
          %v615 = vsub.f32 1.0, %v614
          %v616 = vmul.f32 %v613, %v615
          %v617 = vadd.f32 %v613, %v616
          %vm618 = vweird.f32 %v612
          %vm619 = vweird.f32 %v613
          %vm620 = vmor %vm618, %vm619
          %v621 = vsel %vm620, %v613, %v617
          %v622 = vand.u32 2147483647, %v612
          %vm623 = vcmp.eq.f32.partialorder %v622, 8.507059e+37
          %v624 = vand.u32 %v612, 2147483648
          %v625 = vor.u32 1.1754944e-38, %v624
          %v626 = vsel %vm623, %v625, %v621
          %v627 = vmul.f32 1.0, %v626
          %628 = vst [vmem:[%s239] sm:$0x1] %v627
        $region48: #{inceptionv3_rank_forward.1} parent=39 // pred_fallthru
          _
        %s629 = sand.u32 %s151, 1
        %s630 = scalar_lea.sflag [#allocation4], %s629
        %s631 = sand.u32 %s151, 1
        %s632 = scalar_lea.vmem [#allocation3], %s631
        // Predicated region
        $region49: #{inceptionv3_rank_forward.1} parent=39 // pred_check
          %p633 = pneg %p161
        $region50: #{inceptionv3_rank_forward.1} parent=39 // pred_check_branch
          %635 = sbr.rel (%p633) target = $region52
        $region51: #{inceptionv3_rank_forward.1} parent=39 // pred_region
          %637 = vsyncadd %s630, 0
          %s638 = scalar_lea.hbm %s5, %s23
          %s640 = sshll.u32 %s632, 4
          %s641 = int_to_ptr.vmem [resolvable:$true] %s640
          %s642 = sshll.u32 %s638, 4
          %s643 = int_to_ptr.hbm [resolvable:$true] %s642
          %645 = dma.vmem_to_hbm [thread:$0]  %s641, 16, %s643, %s630
        $region52: #{inceptionv3_rank_forward.1} parent=39 // pred_fallthru
          _
      $region40: #{inceptionv3_rank_forward.1} parent=5 // pred_fallthru
        _
      %p646 = scmp.le.s32.totalorder 2, %s14
      // Predicated region
      $region53: #{inceptionv3_rank_forward.1} parent=5 // pred_check
        %p647 = pneg %p646
      $region54: #{inceptionv3_rank_forward.1} parent=5 // pred_check_branch
        %649 = sbr.rel (%p647) target = $region56
      $region55: #{inceptionv3_rank_forward.1} parent=5 // pred_region
        %s650 = ssub.s32 %s14, 2
        // Predicated region
        $region57: #{inceptionv3_rank_forward.1} parent=55 // pred_check
          %p651 = pneg %p167
        $region58: #{inceptionv3_rank_forward.1} parent=55 // pred_check_branch
          %653 = sbr.rel (%p651) target = $region60
        $region59: #{inceptionv3_rank_forward.1} parent=55 // pred_region
          %s654 = sand.u32 %s152, 1
          %s655 = scalar_lea.sflag [#allocation4], %s654
          %s656 = sand.u32 %s152, 1
          %s657 = scalar_lea.vmem [#allocation3], %s656
          %659 = dma.done %s655, 16
        $region60: #{inceptionv3_rank_forward.1} parent=55 // pred_fallthru
          _
      $region56: #{inceptionv3_rank_forward.1} parent=5 // pred_fallthru
        _
    $region6: #{inceptionv3_rank_forward.1} parent=1 // loop_footer
      %s18 = sadd.s32 1, %s14
    $region7: #{inceptionv3_rank_forward.1} parent=1 // loop_footer_branch
      %13 = sbr.rel target = $region3
    $region8: #{inceptionv3_rank_forward.1} parent=1 // loop_exit
      _
    %660 = vsyncpa [#allocation4], 1
    %s661 = scalar_lea.sflag [#allocation4], 1
    %662 = vsyncpa %s661, 1

</llo_original>
